<compile_context>
chip_gen: v7x
topology: tpu7x:2x2x1
jax: 0.10.0
libtpu: 0.0.40
codegen_flags: <defaults>
</compile_context>

<pallas_src>
import functools

import jax
import jax.numpy as jnp
from jax.experimental import pallas as pl
from jax.experimental.pallas import tpu as pltpu

_LANE = 128      # TPU lane width: output last dims padded to this
_SUBLANE = 8     # sublane granularity for the batch (row) tile


def _round_up(n, m):
    return ((n + m - 1) // m) * m


def _lnnet_kernel(x_ref, w1_ref, w2_ref, out_ref, hid_ref):
    # hid = x @ W1   (MXU, fp32 accumulate)
    hid_f32 = jnp.dot(x_ref[...], w1_ref[...], preferred_element_type=jnp.float32)
    hid = hid_f32.astype(hid_ref.dtype)   # stored-dtype hid (stays in vregs)
    hid_ref[...] = hid
    # out = hid @ W2 — fed from the same vreg-resident value the caller sees,
    # so out == hid_returned @ W2 bit-for-bit (PyTorch semantics).
    out_ref[...] = jnp.dot(
        hid, w2_ref[...], preferred_element_type=jnp.float32
    ).astype(out_ref.dtype)


def prepare_params(w_in_hid, w_hid_out):
    """One-time weight preparation (do this at parameter-load time, NOT per step).

    Transposes the PyTorch-layout weights to row-major matmul layout and
    zero-pads the out-feature dims up to a multiple of 128 so the kernel's
    stores are lane-dense.
    """
    hid_dim, in_dim = w_in_hid.shape
    out_dim, hid_dim2 = w_hid_out.shape
    assert hid_dim == hid_dim2
    hid_pad = _round_up(hid_dim, _LANE)
    out_pad = _round_up(out_dim, _LANE)

    w1p = jnp.zeros((in_dim, hid_pad), w_in_hid.dtype).at[:, :hid_dim].set(w_in_hid.T)
    w2p = jnp.zeros((hid_pad, out_pad), w_hid_out.dtype).at[:hid_dim, :out_dim].set(
        w_hid_out.T
    )
    return w1p, w2p, hid_dim, out_dim


@functools.partial(jax.jit, static_argnums=(3, 4, 5))
def lnnet_forward(x, w1p, w2p, hid_dim, out_dim, block_m=256):
    """Pallas forward pass of LNNet.

    Args:
      x:    (B, in_dim) input batch.
      w1p:  (in_dim,  hid_pad) pre-transposed / lane-padded weight (prepare_params).
      w2p:  (hid_pad, out_pad) pre-transposed / lane-padded weight (prepare_params).
      hid_dim, out_dim: true (unpadded) feature sizes.

    Returns:
      (out, hid): out (B, out_dim), hid (B, hid_dim) — same as LNNet.forward.
    """
    B, in_dim = x.shape
    hid_pad = w1p.shape[1]
    out_pad = w2p.shape[1]
    itemsize = jnp.dtype(x.dtype).itemsize

    # Batch tiling: 128/256-class row tiles when B is large, single tile when tiny.
    tm = min(_round_up(B, _SUBLANE), block_m)
    b_pad = _round_up(B, tm)
    if b_pad != B:
        x_in = jnp.zeros((b_pad, in_dim), x.dtype).at[:B].set(x)
    else:
        x_in = x
    grid = (b_pad // tm,)

    # Advisory cost estimate so XLA schedules around this opaque call sensibly.
    flops = 2 * b_pad * in_dim * hid_pad + 2 * b_pad * hid_pad * out_pad
    bytes_accessed = itemsize * (
        x_in.size + w1p.size + w2p.size + b_pad * hid_pad + b_pad * out_pad
    )
    cost = pl.CostEstimate(
        flops=flops, transcendentals=0, bytes_accessed=bytes_accessed
    )

    # VMEM budget: double-buffered x tile + resident weights + output tiles,
    # with 2x headroom; capped well under v7x's 64 MiB per-TC VMEM.
    vmem_need = itemsize * (
        2 * tm * in_dim                       # x tile (double-buffered)
        + w1p.size + w2p.size                 # grid-invariant weights
        + 2 * tm * hid_pad + 2 * tm * out_pad  # output tiles
    )
    vmem_limit = int(min(max(2 * vmem_need, 4 * 1024 * 1024), 48 * 1024 * 1024))

    out_p, hid_p = pl.pallas_call(
        _lnnet_kernel,
        out_shape=(
            jax.ShapeDtypeStruct((b_pad, out_pad), x.dtype),
            jax.ShapeDtypeStruct((b_pad, hid_pad), x.dtype),
        ),
        grid=grid,
        in_specs=[
            pl.BlockSpec((tm, in_dim), lambda i: (i, 0)),
            # Grid-invariant weight blocks: fetched once, stay VMEM-resident.
            pl.BlockSpec((in_dim, hid_pad), lambda i: (0, 0)),
            pl.BlockSpec((hid_pad, out_pad), lambda i: (0, 0)),
        ],
        out_specs=(
            pl.BlockSpec((tm, out_pad), lambda i: (i, 0)),
            pl.BlockSpec((tm, hid_pad), lambda i: (i, 0)),
        ),
        compiler_params=pltpu.CompilerParams(
            dimension_semantics=("parallel",),
            vmem_limit_bytes=vmem_limit,
        ),
        cost_estimate=cost,
    )(x_in, w1p, w2p)

    # Slice padded rows/lanes back off (cheap; fuses into downstream consumers).
    return out_p[:B, :out_dim], hid_p[:B, :hid_dim]


def _ref_forward(x, w_in_hid, w_hid_out):
    hid = x @ w_in_hid.T
    out = hid @ w_hid_out.T
    return out, hid


if __name__ == "__main__":
    # Small shapes implied by the module: batch=8, in_dim=32, hid=64, out=16.
    B, in_dim, hid_dim, out_dim = 8, 32, 64, 16

    key = jax.random.PRNGKey(0)
    kx, k1, k2 = jax.random.split(key, 3)

    x = jax.random.normal(kx, (B, in_dim), dtype=jnp.float32)
    # Deterministic init mimicking nn.Linear's uniform(-1/sqrt(fan_in), +1/sqrt(fan_in)).
    w_in_hid = jax.random.uniform(
        k1, (hid_dim, in_dim), dtype=jnp.float32,
        minval=-1.0 / jnp.sqrt(in_dim), maxval=1.0 / jnp.sqrt(in_dim))
    w_hid_out = jax.random.uniform(
        k2, (out_dim, hid_dim), dtype=jnp.float32,
        minval=-1.0 / jnp.sqrt(hid_dim), maxval=1.0 / jnp.sqrt(hid_dim))

    # One-time parameter prep (transpose + lane padding) — not on the hot path.
    w1p, w2p, hd, od = prepare_params(w_in_hid, w_hid_out)
    w1p = jax.block_until_ready(w1p)
    w2p = jax.block_until_ready(w2p)

    out, hid = lnnet_forward(x, w1p, w2p, hd, od)
    out = jax.block_until_ready(out)
    hid = jax.block_until_ready(hid)

    out_ref, hid_ref = _ref_forward(x, w_in_hid, w_hid_out)
    assert out.shape == (B, out_dim) and hid.shape == (B, hid_dim)
    assert jnp.allclose(out, out_ref, atol=1e-5, rtol=1e-5)
    assert jnp.allclose(hid, hid_ref, atol=1e-5, rtol=1e-5)

    print("KERNEL_OK")
</pallas_src>

<mosaic_0001>
module attributes {stable_mosaic.version = 11 : i64} {
  func.func @_lnnet_kernel(%arg0: i32, %arg1: memref<8x32xf32, #tpu.memory_space<vmem>>, %arg2: memref<32x128xf32, #tpu.memory_space<vmem>>, %arg3: memref<128x128xf32, #tpu.memory_space<vmem>>, %arg4: memref<8x128xf32, #tpu.memory_space<vmem>>, %arg5: memref<8x128xf32, #tpu.memory_space<vmem>>) attributes {dimension_semantics = [#tpu.dimension_semantics<parallel>], iteration_bounds = array<i64: 1>, scalar_prefetch = 0 : i64, scratch_operands = 0 : i64, tpu.core_type = #tpu.core_type<tc>, window_params = [{transform_indices = @transform_0, window_bounds = array<i64: 8, 32>}, {pipeline_mode = #tpu.pipeline_mode<synchronous>, transform_indices = @transform_1, window_bounds = array<i64: 32, 128>}, {pipeline_mode = #tpu.pipeline_mode<synchronous>, transform_indices = @transform_2, window_bounds = array<i64: 128, 128>}, {transform_indices = @transform_3, window_bounds = array<i64: 8, 128>}, {transform_indices = @transform_4, window_bounds = array<i64: 8, 128>}]} {
    %c0 = arith.constant 0 : index
    %c0_0 = arith.constant 0 : index
    %0 = vector.load %arg1[%c0, %c0_0] : memref<8x32xf32, #tpu.memory_space<vmem>>, vector<8x32xf32>
    %c0_1 = arith.constant 0 : index
    %c0_2 = arith.constant 0 : index
    %1 = vector.load %arg2[%c0_1, %c0_2] : memref<32x128xf32, #tpu.memory_space<vmem>>, vector<32x128xf32>
    %cst = arith.constant dense<0.000000e+00> : vector<8x128xf32>
    %2 = tpu.matmul %0, %1, %cst {dimension_numbers = #tpu.dot_dimension_numbers<[1], [0], [0], [1], [0, 0, 1, 1], [], []>} : vector<8x32xf32>, vector<32x128xf32>, vector<8x128xf32> -> vector<8x128xf32>
    %c0_3 = arith.constant 0 : index
    %c0_4 = arith.constant 0 : index
    %3 = vector.load %arg5[%c0_3, %c0_4] : memref<8x128xf32, #tpu.memory_space<vmem>>, vector<8x128xf32>
    tpu.vector_store %arg5[%c0_3, %c0_4], %2 {strides = array<i32>} : memref<8x128xf32, #tpu.memory_space<vmem>>, vector<8x128xf32>,
    %c0_5 = arith.constant 0 : index
    %c0_6 = arith.constant 0 : index
    %4 = vector.load %arg3[%c0_5, %c0_6] : memref<128x128xf32, #tpu.memory_space<vmem>>, vector<128x128xf32>
    %cst_7 = arith.constant dense<0.000000e+00> : vector<8x128xf32>
    %5 = tpu.matmul %2, %4, %cst_7 {dimension_numbers = #tpu.dot_dimension_numbers<[1], [0], [0], [1], [0, 0, 1, 1], [], []>} : vector<8x128xf32>, vector<128x128xf32>, vector<8x128xf32> -> vector<8x128xf32>
    %c0_8 = arith.constant 0 : index
    %c0_9 = arith.constant 0 : index
    %6 = vector.load %arg4[%c0_8, %c0_9] : memref<8x128xf32, #tpu.memory_space<vmem>>, vector<8x128xf32>
    tpu.vector_store %arg4[%c0_8, %c0_9], %5 {strides = array<i32>} : memref<8x128xf32, #tpu.memory_space<vmem>>, vector<8x128xf32>,
    return
  }
  func.func @transform_0(%arg0: i32) -> (i32, i32) {
    %c0_i32 = arith.constant 0 : i32
    %c0_i32_0 = arith.constant 0 : i32
    return %arg0, %c0_i32 : i32, i32
  }
  func.func @transform_1(%arg0: i32) -> (i32, i32) {
    %c0_i32 = arith.constant 0 : i32
    %c0_i32_0 = arith.constant 0 : i32
    %c0_i32_1 = arith.constant 0 : i32
    return %c0_i32, %c0_i32_0 : i32, i32
  }
  func.func @transform_2(%arg0: i32) -> (i32, i32) {
    %c0_i32 = arith.constant 0 : i32
    %c0_i32_0 = arith.constant 0 : i32
    %c0_i32_1 = arith.constant 0 : i32
    return %c0_i32, %c0_i32_0 : i32, i32
  }
  func.func @transform_3(%arg0: i32) -> (i32, i32) {
    %c0_i32 = arith.constant 0 : i32
    %c0_i32_0 = arith.constant 0 : i32
    return %arg0, %c0_i32 : i32, i32
  }
  func.func @transform_4(%arg0: i32) -> (i32, i32) {
    %c0_i32 = arith.constant 0 : i32
    %c0_i32_0 = arith.constant 0 : i32
    return %arg0, %c0_i32 : i32, i32
  }
}

</mosaic_0001>

<llo_original>
// kernel: lnnet_forward.1
$region0: #{lnnet_forward.1}
  #allocation0 [shape = 'u32[]', space=smem, size = 0x4, offset = 0x4, fixed_abs, tag = 'smem constant byte address 0x4 - core index']
  #allocation1 [shape = 'u32[144,128]{1,0:T(1,128)}', space=vmem, size = 0x12000, scoped, tag = 'internal scratch']
  %s0 = inlined_call_operand.hbm [shape: f32[8,32], index: 0, kind: input, shape index: {}]
  %s1 = inlined_call_operand.hbm [shape: f32[32,128], index: 1, kind: input, shape index: {}]
  %s2 = inlined_call_operand.hbm [shape: f32[128,128], index: 2, kind: input, shape index: {}]
  %s3 = inlined_call_operand.hbm [shape: f32[8,128], index: 3, kind: output, shape index: {0}]
  %s4 = inlined_call_operand.hbm [shape: f32[8,128], index: 4, kind: output, shape index: {1}]
  %5 = xla_tuple %s3, %s4
  %s6 = sld [smem:[#allocation0]]
  $region42: #{lnnet_forward.1} parent=0
    _
  %s8 = ssub.s32 1, %s6
  %s9 = scalar_select 0, %s8, %s6
  $region1: #{lnnet_forward.1} parent=0
    #allocation2 [shape = 'u8[4096]{0}', space=vmem, size = 0x1000, scoped, tag = 'input window, operand 0, single buffered']
    #allocation3 [shape = 's32[1]{0}', space=sflag, size = 0x4, scoped, tag = 'scoped memory for lnnet_forward.1']
    #allocation4 [shape = 's32[1]{0}', space=sflag, size = 0x4, scoped, tag = 'scoped memory for lnnet_forward.1']
    #allocation5 [shape = 'u8[16384]{0}', space=vmem, size = 0x4000, scoped, tag = 'input window, operand 1, single buffered']
    #allocation6 [shape = 's32[1]{0}', space=sflag, size = 0x4, scoped, tag = 'scoped memory for lnnet_forward.1']
    #allocation7 [shape = 'u8[65536]{0}', space=vmem, size = 0x10000, scoped, tag = 'input window, operand 2, single buffered']
    #allocation8 [shape = 'u8[4096]{0}', space=vmem, size = 0x1000, scoped, tag = 'output window, operand 0, single buffered']
    #allocation9 [shape = 'u8[4096]{0}', space=vmem, size = 0x1000, scoped, tag = 'output window, operand 1, single buffered']
    #allocation10 [shape = 's32[1]{0}', space=sflag, size = 0x4, scoped, tag = 'scoped memory for lnnet_forward.1']
    %10 = vsyncpa [#allocation3], 0
    %11 = vsyncpa [#allocation6], 0
    %12 = vsyncpa [#allocation4], 0
    %13 = vsyncpa [#allocation10], 0
    // Predicated region
    $region2: #{lnnet_forward.1} parent=1 // pred_check
      _
    $region3: #{lnnet_forward.1} parent=1 // pred_check_branch
      %15 = sbr.rel (0) target = $region5
    $region4: #{lnnet_forward.1} parent=1 // pred_region
      %s17 = ssub.s32 128, 128
      %18 = vsyncadd [#allocation3], %s17
      %s20 = sshll.u32 [#allocation2], 4
      %s21 = int_to_ptr.vmem [resolvable:$true] %s20
      %23 = dma.hbm_to_vmem [thread:$0]  %s0, 128, %s21, [#allocation3]
    $region5: #{lnnet_forward.1} parent=1 // pred_fallthru
      _
    // Predicated region
    $region6: #{lnnet_forward.1} parent=1 // pred_check
      _
    $region7: #{lnnet_forward.1} parent=1 // pred_check_branch
      %25 = sbr.rel (0) target = $region9
    $region8: #{lnnet_forward.1} parent=1 // pred_region
      %s27 = ssub.s32 512, 512
      %28 = vsyncadd [#allocation6], %s27
      %s29 = sshll.u32 [#allocation5], 4
      %s30 = int_to_ptr.vmem [resolvable:$true] %s29
      %35 = dma.hbm_to_vmem [thread:$0]  %s1, 512, %s30, [#allocation6], 128, 128, 8
    $region9: #{lnnet_forward.1} parent=1 // pred_fallthru
      _
    // Predicated region
    $region10: #{lnnet_forward.1} parent=1 // pred_check
      _
    $region11: #{lnnet_forward.1} parent=1 // pred_check_branch
      %37 = sbr.rel (0) target = $region13
    $region12: #{lnnet_forward.1} parent=1 // pred_region
      %s39 = ssub.s32 2048, 2048
      %40 = vsyncadd [#allocation6], %s39
      %s41 = sshll.u32 [#allocation7], 4
      %s42 = int_to_ptr.vmem [resolvable:$true] %s41
      %47 = dma.hbm_to_vmem [thread:$0]  %s2, 2048, %s42, [#allocation6], 128, 128, 8
    $region13: #{lnnet_forward.1} parent=1 // pred_fallthru
      _
    // Predicated region
    $region14: #{lnnet_forward.1} parent=1 // pred_check
      _
    $region15: #{lnnet_forward.1} parent=1 // pred_check_branch
      %49 = sbr.rel (0) target = $region17
    $region16: #{lnnet_forward.1} parent=1 // pred_region
      %50 = dma.done [#allocation3], 128
    $region17: #{lnnet_forward.1} parent=1 // pred_fallthru
      _
    // Predicated region
    $region18: #{lnnet_forward.1} parent=1 // pred_check
      _
    $region19: #{lnnet_forward.1} parent=1 // pred_check_branch
      %52 = sbr.rel (0) target = $region21
    $region20: #{lnnet_forward.1} parent=1 // pred_region
      %53 = dma.done [#allocation6], 512
    $region21: #{lnnet_forward.1} parent=1 // pred_fallthru
      _
    // Predicated region
    $region22: #{lnnet_forward.1} parent=1 // pred_check
      _
    $region23: #{lnnet_forward.1} parent=1 // pred_check_branch
      %55 = sbr.rel (0) target = $region25
    $region24: #{lnnet_forward.1} parent=1 // pred_region
      %56 = dma.done [#allocation6], 2048
    $region25: #{lnnet_forward.1} parent=1 // pred_fallthru
      _
    %v57 = vld [vmem:[#allocation2] sm:$0xff]
    %v58 = vld [vmem:[#allocation5] sm:$0xff]
    %v59 = vld [vmem:[#allocation5 + $0x8] sm:$0xff]
    %v60 = vld [vmem:[#allocation5 + $0x10] sm:$0xff]
    %v61 = vld [vmem:[#allocation5 + $0x18] sm:$0xff]
    %vm62 = vcmask 261120
    %v64 = vsel %vm62, %v57, 0
    %66 = vmatprep.subr.mxu0 0.0
    %67 = vmatpush1.msra.mxu0 %v58
    %68 = vmatprep.subr.mxu0 0.0
    %69 = vmatpush1.msra.mxu0 %v59
    %70 = vmatprep.subr.mxu0 0.0
    %71 = vmatpush1.msra.mxu0 %v60
    %72 = vmatprep.subr.mxu0 0.0
    %73 = vmatpush1.msra.mxu0 %v61
    %74 = vmatprep.subr.mxu0 0.0
    %75 = vmatpush1.msra.mxu0 0.0
    %76 = vmatprep.subr.mxu0 0.0
    %77 = vmatpush1.msra.mxu0 0.0
    %78 = vmatprep.subr.mxu0 0.0
    %79 = vmatpush1.msra.mxu0 0.0
    %80 = vmatprep.subr.mxu0 0.0
    %81 = vmatpush1.msra.mxu0 0.0
    %82 = vmatprep.subr.mxu0 0.0
    %83 = vmatpush1.msra.mxu0 0.0
    %84 = vmatprep.subr.mxu0 0.0
    %85 = vmatpush1.msra.mxu0 0.0
    %86 = vmatprep.subr.mxu0 0.0
    %87 = vmatpush1.msra.mxu0 0.0
    %88 = vmatprep.subr.mxu0 0.0
    %89 = vmatpush1.msra.mxu0 0.0
    %90 = vmatprep.subr.mxu0 0.0
    %91 = vmatpush1.msra.mxu0 0.0
    %92 = vmatprep.subr.mxu0 0.0
    %93 = vmatpush1.msra.mxu0 0.0
    %94 = vmatprep.subr.mxu0 0.0
    %95 = vmatpush1.msra.mxu0 0.0
    %96 = vmatprep.subr.mxu0 0.0
    %97 = vmatpush1.msra.mxu0 0.0
    %98 = vmatprep.subr.mxu0 0.0
    %99 = vmatpush1.msra.mxu0 0.0
    %100 = vmatprep.subr.mxu0 0.0
    %101 = vmatpush1.msra.mxu0 0.0
    %102 = vmatprep.subr.mxu0 0.0
    %103 = vmatpush1.msra.mxu0 0.0
    %104 = vmatprep.subr.mxu0 0.0
    %105 = vmatpush1.msra.mxu0 0.0
    %106 = vmatprep.subr.mxu0 0.0
    %107 = vmatpush1.msra.mxu0 0.0
    %108 = vmatprep.subr.mxu0 0.0
    %109 = vmatpush1.msra.mxu0 0.0
    %110 = vmatprep.subr.mxu0 0.0
    %111 = vmatpush1.msra.mxu0 0.0
    %112 = vmatprep.subr.mxu0 0.0
    %113 = vmatpush1.msra.mxu0 0.0
    %114 = vmatprep.subr.mxu0 0.0
    %115 = vmatpush1.msra.mxu0 0.0
    %116 = vmatprep.subr.mxu0 0.0
    %117 = vmatpush1.msra.mxu0 0.0
    %118 = vmatprep.subr.mxu0 0.0
    %119 = vmatpush1.msra.mxu0 0.0
    %120 = vmatprep.subr.mxu0 0.0
    %121 = vmatpush1.msra.mxu0 0.0
    %122 = vmatprep.subr.mxu0 0.0
    %123 = vmatpush1.msra.mxu0 0.0
    %124 = vmatprep.subr.mxu0 0.0
    %125 = vmatpush1.msra.mxu0 0.0
    %126 = vmatprep.subr.mxu0 0.0
    %127 = vmatpush1.msra.mxu0 0.0
    %128 = vmatprep.subr.mxu0 0.0
    %129 = vmatpush1.msra.mxu0 0.0
    %130 = vmatprep.mubr.f32.mxu0 0.0
    %131 = vmatmul.mubr.f32.gmra.mrb[0].mxu0 %v64
    %v132 = vpop.f32.mrb[0].mxu0
    %v133 = vadd.f32 0.0, %v132
    %v134 = vpop.f32.mrb[0].mxu0
    %135 = vdwg.mxu0
    %136 = vst [vmem:[#allocation9] sm:$0xff] %v133
    %v137 = vld [vmem:[#allocation7] sm:$0xff]
    %v138 = vld [vmem:[#allocation7 + $0x8] sm:$0xff]
    %v139 = vld [vmem:[#allocation7 + $0x10] sm:$0xff]
    %v140 = vld [vmem:[#allocation7 + $0x18] sm:$0xff]
    %v141 = vld [vmem:[#allocation7 + $0x20] sm:$0xff]
    %v142 = vld [vmem:[#allocation7 + $0x28] sm:$0xff]
    %v143 = vld [vmem:[#allocation7 + $0x30] sm:$0xff]
    %v144 = vld [vmem:[#allocation7 + $0x38] sm:$0xff]
    %v145 = vld [vmem:[#allocation7 + $0x40] sm:$0xff]
    %v146 = vld [vmem:[#allocation7 + $0x48] sm:$0xff]
    %v147 = vld [vmem:[#allocation7 + $0x50] sm:$0xff]
    %v148 = vld [vmem:[#allocation7 + $0x58] sm:$0xff]
    %v149 = vld [vmem:[#allocation7 + $0x60] sm:$0xff]
    %v150 = vld [vmem:[#allocation7 + $0x68] sm:$0xff]
    %v151 = vld [vmem:[#allocation7 + $0x70] sm:$0xff]
    %v152 = vld [vmem:[#allocation7 + $0x78] sm:$0xff]
    %153 = vmatprep.subr.mxu0 0.0
    %154 = vmatpush1.msra.mxu0 %v137
    %155 = vmatprep.subr.mxu0 0.0
    %156 = vmatpush1.msra.mxu0 %v138
    %157 = vmatprep.subr.mxu0 0.0
    %158 = vmatpush1.msra.mxu0 %v139
    %159 = vmatprep.subr.mxu0 0.0
    %160 = vmatpush1.msra.mxu0 %v140
    %161 = vmatprep.subr.mxu0 0.0
    %162 = vmatpush1.msra.mxu0 %v141
    %163 = vmatprep.subr.mxu0 0.0
    %164 = vmatpush1.msra.mxu0 %v142
    %165 = vmatprep.subr.mxu0 0.0
    %166 = vmatpush1.msra.mxu0 %v143
    %167 = vmatprep.subr.mxu0 0.0
    %168 = vmatpush1.msra.mxu0 %v144
    %169 = vmatprep.subr.mxu0 0.0
    %170 = vmatpush1.msra.mxu0 %v145
    %171 = vmatprep.subr.mxu0 0.0
    %172 = vmatpush1.msra.mxu0 %v146
    %173 = vmatprep.subr.mxu0 0.0
    %174 = vmatpush1.msra.mxu0 %v147
    %175 = vmatprep.subr.mxu0 0.0
    %176 = vmatpush1.msra.mxu0 %v148
    %177 = vmatprep.subr.mxu0 0.0
    %178 = vmatpush1.msra.mxu0 %v149
    %179 = vmatprep.subr.mxu0 0.0
    %180 = vmatpush1.msra.mxu0 %v150
    %181 = vmatprep.subr.mxu0 0.0
    %182 = vmatpush1.msra.mxu0 %v151
    %183 = vmatprep.subr.mxu0 0.0
    %184 = vmatpush1.msra.mxu0 %v152
    %185 = vmatprep.subr.mxu0 0.0
    %186 = vmatpush1.msra.mxu0 0.0
    %187 = vmatprep.subr.mxu0 0.0
    %188 = vmatpush1.msra.mxu0 0.0
    %189 = vmatprep.subr.mxu0 0.0
    %190 = vmatpush1.msra.mxu0 0.0
    %191 = vmatprep.subr.mxu0 0.0
    %192 = vmatpush1.msra.mxu0 0.0
    %193 = vmatprep.subr.mxu0 0.0
    %194 = vmatpush1.msra.mxu0 0.0
    %195 = vmatprep.subr.mxu0 0.0
    %196 = vmatpush1.msra.mxu0 0.0
    %197 = vmatprep.subr.mxu0 0.0
    %198 = vmatpush1.msra.mxu0 0.0
    %199 = vmatprep.subr.mxu0 0.0
    %200 = vmatpush1.msra.mxu0 0.0
    %201 = vmatprep.subr.mxu0 0.0
    %202 = vmatpush1.msra.mxu0 0.0
    %203 = vmatprep.subr.mxu0 0.0
    %204 = vmatpush1.msra.mxu0 0.0
    %205 = vmatprep.subr.mxu0 0.0
    %206 = vmatpush1.msra.mxu0 0.0
    %207 = vmatprep.subr.mxu0 0.0
    %208 = vmatpush1.msra.mxu0 0.0
    %209 = vmatprep.subr.mxu0 0.0
    %210 = vmatpush1.msra.mxu0 0.0
    %211 = vmatprep.subr.mxu0 0.0
    %212 = vmatpush1.msra.mxu0 0.0
    %213 = vmatprep.subr.mxu0 0.0
    %214 = vmatpush1.msra.mxu0 0.0
    %215 = vmatprep.subr.mxu0 0.0
    %216 = vmatpush1.msra.mxu0 0.0
    %217 = vmatprep.mubr.f32.mxu0 0.0
    %218 = vmatmul.mubr.f32.gmra.mrb[0].mxu0 %v133
    %v219 = vpop.f32.mrb[0].mxu0
    %v220 = vadd.f32 0.0, %v219
    %v221 = vpop.f32.mrb[0].mxu0
    %222 = vdwg.mxu0
    %223 = vst [vmem:[#allocation8] sm:$0xff] %v220
    // Predicated region
    $region26: #{lnnet_forward.1} parent=1 // pred_check
      _
    $region27: #{lnnet_forward.1} parent=1 // pred_check_branch
      %225 = sbr.rel (0) target = $region29
    $region28: #{lnnet_forward.1} parent=1 // pred_region
      %s227 = ssub.s32 128, 128
      %228 = vsyncadd [#allocation4], %s227
      %s230 = sshll.u32 [#allocation8], 4
      %s231 = int_to_ptr.vmem [resolvable:$true] %s230
      %233 = dma.vmem_to_hbm [thread:$0]  %s231, 128, %s3, [#allocation4]
    $region29: #{lnnet_forward.1} parent=1 // pred_fallthru
      _
    // Predicated region
    $region30: #{lnnet_forward.1} parent=1 // pred_check
      _
    $region31: #{lnnet_forward.1} parent=1 // pred_check_branch
      %235 = sbr.rel (0) target = $region33
    $region32: #{lnnet_forward.1} parent=1 // pred_region
      %s237 = ssub.s32 128, 128
      %238 = vsyncadd [#allocation10], %s237
      %s240 = sshll.u32 [#allocation9], 4
      %s241 = int_to_ptr.vmem [resolvable:$true] %s240
      %243 = dma.vmem_to_hbm [thread:$0]  %s241, 128, %s4, [#allocation10]
    $region33: #{lnnet_forward.1} parent=1 // pred_fallthru
      _
    // Predicated region
    $region34: #{lnnet_forward.1} parent=1 // pred_check
      _
    $region35: #{lnnet_forward.1} parent=1 // pred_check_branch
      %245 = sbr.rel (0) target = $region37
    $region36: #{lnnet_forward.1} parent=1 // pred_region
      %246 = dma.done [#allocation4], 128
    $region37: #{lnnet_forward.1} parent=1 // pred_fallthru
      _
    // Predicated region
    $region38: #{lnnet_forward.1} parent=1 // pred_check
      _
    $region39: #{lnnet_forward.1} parent=1 // pred_check_branch
      %248 = sbr.rel (0) target = $region41
    $region40: #{lnnet_forward.1} parent=1 // pred_region
      %249 = dma.done [#allocation10], 128
    $region41: #{lnnet_forward.1} parent=1 // pred_fallthru
      _
    %250 = vsyncpa [#allocation3], 1
    %251 = vsyncpa [#allocation6], 1
    %252 = vsyncpa [#allocation4], 1
    %253 = vsyncpa [#allocation10], 1

</llo_original>
